<compile_context>
chip_gen: v5e
topology: v5e:2x2
jax: 0.10.0
libtpu: 0.0.40
codegen_flags: <defaults>
</compile_context>

<pallas_src>
import functools

import jax
import jax.numpy as jnp
from jax.experimental import pallas as pl
from jax.experimental.pallas import tpu as pltpu


def double_conv_kernel(x_ref, wb1_ref, wb2_ref, b1_ref, b2_ref, o_ref,
                       xpad_ref, hpad_ref, *, B, H):
    """One grid step = B batch elements; both conv+BN+ReLU stages fused.

    x_ref:    (B, H, W*Cin)        lane-dense input slabs (compute dtype)
    wb1_ref:  (3, W*Cin,  W*Cmid)  banded conv1 weights (BN scale folded)
    wb2_ref:  (3, W*Cmid, W*Cout)  banded conv2 weights (BN scale folded)
    b1_ref:   (1, W*Cmid) f32      BN bias, tiled across W
    b2_ref:   (1, W*Cout) f32
    o_ref:    (B, H, W*Cout)       lane-dense output slabs
    xpad_ref: (B*(H+2), W*Cin)     scratch: stacked H-padded inputs
    hpad_ref: (B*(H+2), W*Cmid)    scratch: stacked H-padded intermediate
                                   (never round-trips to HBM)

    Element b occupies rows [b*(H+2), (b+1)*(H+2)) of a padded slab: row
    b*(H+2) and row b*(H+2)+H+1 are zero halos, rows +1..+H are data.
    """
    slab = H + 2
    m = B * slab - 2  # matmul M: the last useful output row is B*slab - 3

    def zero_halos(ref):
        # Zero ONLY the halo rows (2 per element); all data rows are fully
        # overwritten each step, so no full-slab memset is needed.
        z = jnp.zeros((1, ref.shape[-1]), ref.dtype)
        for b in range(B):
            ref[pl.ds(b * slab, 1), :] = z
            ref[pl.ds(b * slab + H + 1, 1), :] = z

    def banded_conv(src_ref, wb_ref):
        # 3x3 conv == 3 banded matmuls (one per kernel row ky).  The kx taps
        # and W zero-padding live in the band, the H zero-padding in the halo
        # rows; rows that mix adjacent elements are discarded at store time.
        # Keep the accumulation chain contiguous (no intervening VPU work) so
        # v7x can accumulate in the MRB instead of popping partials.
        acc = jnp.dot(src_ref[pl.ds(0, m), :], wb_ref[0],
                      preferred_element_type=jnp.float32)
        acc = acc + jnp.dot(src_ref[pl.ds(1, m), :], wb_ref[1],
                            preferred_element_type=jnp.float32)
        acc = acc + jnp.dot(src_ref[pl.ds(2, m), :], wb_ref[2],
                            preferred_element_type=jnp.float32)
        return acc

    # Stage the B input slabs into the stacked padded scratch (halo rows
    # zeroed, data rows copied from the auto-pipelined input block).
    zero_halos(xpad_ref)
    for b in range(B):
        xpad_ref[pl.ds(b * slab + 1, H), :] = x_ref[b]

    # Conv1 + BN bias + ReLU (scale already folded into wb1); f32 epilogue.
    h = jnp.maximum(banded_conv(xpad_ref, wb1_ref) + b1_ref[...], 0.0)

    # Intermediate stays in VMEM: one bulk shifted store (row j -> row j+1
    # lands every element's rows at the right padded offset), then re-zero
    # the halo rows that the bulk store overwrote with discard rows.
    hpad_ref[pl.ds(1, m), :] = h.astype(hpad_ref.dtype)
    zero_halos(hpad_ref)

    # Conv2 + BN bias + ReLU; keep only each element's interior H rows.
    y = banded_conv(hpad_ref, wb2_ref)
    bias2 = b2_ref[...]
    for b in range(B):
        rows = y[b * slab:b * slab + H]
        o_ref[b] = jnp.maximum(rows + bias2, 0.0).astype(o_ref.dtype)


def fold_bn(gamma, beta, running_mean, running_var, eps=1e-5):
    scale = gamma / jnp.sqrt(running_var + eps)
    bias = beta - running_mean * scale
    return scale, bias


def build_banded_weights(wt, W):
    """wt: (3, 3, Cin, Cout) conv taps (BN scale already folded), f32.

    Returns (3, W*Cin, W*Cout): for each kernel row ky a block-banded matrix
    mapping a flattened image row (W*Cin lanes) to a flattened output row
    (W*Cout lanes).  The three kx taps and the zero padding along W are baked
    into the band structure, so the kernel needs no per-tap slicing.
    """
    _, _, Cin, Cout = wt.shape
    src = jnp.arange(W)[:, None]      # input column  w'
    dst = jnp.arange(W)[None, :]      # output column w
    bands = []
    for ky in range(3):
        blk = jnp.zeros((W, W, Cin, Cout), wt.dtype)
        for kx in range(3):
            sel = (src == dst + (kx - 1)).astype(wt.dtype)            # (W, W)
            blk = blk + sel[:, :, None, None] * wt[ky, kx][None, None]
        # [w', w, ci, co] -> [(w'*Cin + ci), (w*Cout + co)]
        bands.append(jnp.transpose(blk, (0, 2, 1, 3)).reshape(W * Cin,
                                                              W * Cout))
    return jnp.stack(bands)


def _pick_batch_block(n):
    """Largest divisor of n that keeps the grid length >= 2 (v7x megacore)."""
    if n <= 2:
        return 1
    for b in range(n // 2, 0, -1):
        if n % b == 0:
            return b
    return 1


def double_conv_forward(x_nchw, params, *, compute_dtype=jnp.bfloat16,
                        out_dtype=jnp.float32, batch_block=None):
    """Reproduces DoubleConv.forward (eval-mode BN) on an NCHW f32 input.

    compute_dtype: matmul operand dtype (bf16 = fast MXU path on v6e/v7x;
                   jnp.float32 for bit-accurate f32 convolution).
    out_dtype:     HBM output dtype (bf16 halves writeback -- best on v5e).
    batch_block:   batch elements folded into one grid step (raises MXU M);
                   default keeps the grid length >= 2 for v7x megacore.
    """
    w1_oihw, bn1, w2_oihw, bn2 = params
    N, Cin, H, W = x_nchw.shape
    Cmid = w1_oihw.shape[0]
    Cout = w2_oihw.shape[0]
    B = _pick_batch_block(N) if batch_block is None else int(batch_block)
    assert N % B == 0, "batch_block must divide the batch size"

    # Fold BN (eval) into per-channel scale/bias; fold the scale into the
    # conv weights so the kernel epilogue is only bias + ReLU.
    s1, b1 = fold_bn(*bn1)
    s2, b2 = fold_bn(*bn2)
    wt1 = jnp.transpose(w1_oihw, (2, 3, 1, 0)).astype(jnp.float32) * s1
    wt2 = jnp.transpose(w2_oihw, (2, 3, 1, 0)).astype(jnp.float32) * s2
    wb1 = build_banded_weights(wt1, W).astype(compute_dtype)
    wb2 = build_banded_weights(wt2, W).astype(compute_dtype)
    b1t = jnp.tile(b1.astype(jnp.float32), W).reshape(1, W * Cmid)
    b2t = jnp.tile(b2.astype(jnp.float32), W).reshape(1, W * Cout)

    # NCHW -> lane-dense (N, H, W*Cin) slabs in the compute dtype (one fused
    # XLA transpose pass; would vanish entirely in an NHWC network).
    x_flat = (jnp.transpose(x_nchw, (0, 2, 3, 1))
              .reshape(N, H, W * Cin).astype(compute_dtype))

    # VMEM budget from the real footprint (double-buffered pipeline blocks +
    # persistent scratch) with headroom, instead of a flat 32 MiB; capped at
    # 64 MiB so the limit is still valid on v7x.
    itm = jnp.dtype(compute_dtype).itemsize
    otm = jnp.dtype(out_dtype).itemsize
    w_bytes = 3 * W * Cin * W * Cmid * itm + 3 * W * Cmid * W * Cout * itm
    bias_bytes = (W * Cmid + W * Cout) * 4
    io_bytes = B * H * W * Cin * itm + B * H * W * Cout * otm
    scratch_bytes = B * (H + 2) * W * (Cin + Cmid) * itm
    footprint = 2 * (w_bytes + bias_bytes + io_bytes) + scratch_bytes
    vmem_limit = int(min(64 * 1024 * 1024, max(2 * footprint, 4 * 1024 * 1024)))

    kernel = functools.partial(double_conv_kernel, B=B, H=H)
    y_flat = pl.pallas_call(
        kernel,
        out_shape=jax.ShapeDtypeStruct((N, H, W * Cout), out_dtype),
        grid_spec=pltpu.PrefetchScalarGridSpec(
            num_scalar_prefetch=0,
            grid=(N // B,),
            in_specs=[
                pl.BlockSpec((B, H, W * Cin), lambda n: (n, 0, 0)),
                # Constant index maps: weights/bias are DMA'd once and stay
                # VMEM-resident across the whole batch grid.
                pl.BlockSpec((3, W * Cin, W * Cmid), lambda n: (0, 0, 0)),
                pl.BlockSpec((3, W * Cmid, W * Cout), lambda n: (0, 0, 0)),
                pl.BlockSpec((1, W * Cmid), lambda n: (0, 0)),
                pl.BlockSpec((1, W * Cout), lambda n: (0, 0)),
            ],
            out_specs=pl.BlockSpec((B, H, W * Cout), lambda n: (n, 0, 0)),
            scratch_shapes=[
                pltpu.VMEM((B * (H + 2), W * Cin), compute_dtype),
                pltpu.VMEM((B * (H + 2), W * Cmid), compute_dtype),
            ],
        ),
        compiler_params=pltpu.CompilerParams(
            dimension_semantics=("parallel",),
            vmem_limit_bytes=vmem_limit,
        ),
    )(x_flat, wb1, wb2, b1t, b2t)

    y = y_flat.reshape(N, H, W, Cout)
    return jnp.transpose(y, (0, 3, 1, 2))      # back to NCHW (PyTorch layout)


def init_double_conv_params(key, in_channels, out_channels, mid_channels=None):
    if not mid_channels:
        mid_channels = out_channels
    k1, k2 = jax.random.split(key)
    # Conv weights in PyTorch layout (Cout, Cin, 3, 3), kaiming-like scale.
    w1_oihw = jax.random.normal(k1, (mid_channels, in_channels, 3, 3),
                                jnp.float32) * (2.0 / (in_channels * 9)) ** 0.5
    w2_oihw = jax.random.normal(k2, (out_channels, mid_channels, 3, 3),
                                jnp.float32) * (2.0 / (mid_channels * 9)) ** 0.5
    # BatchNorm2d defaults: gamma=1, beta=0, running_mean=0, running_var=1.
    bn1 = (jnp.ones(mid_channels), jnp.zeros(mid_channels),
           jnp.zeros(mid_channels), jnp.ones(mid_channels))
    bn2 = (jnp.ones(out_channels), jnp.zeros(out_channels),
           jnp.zeros(out_channels), jnp.ones(out_channels))
    return w1_oihw, bn1, w2_oihw, bn2


def ref_forward(x_nchw, params, conv_dtype=jnp.float32):
    """Plain-JAX reference (lax.conv) with eval-mode BN semantics.

    conv_dtype=bf16 mirrors the kernel's mixed precision (bf16 operands, f32
    accumulation) for a tight numerical comparison; f32 gives exact PyTorch
    eval-mode semantics.
    """
    w1, bn1, w2, bn2 = params

    def step(x, w_oihw, bn):
        s, b = fold_bn(*bn)
        w = w_oihw.astype(jnp.float32) * s[:, None, None, None]
        y = jax.lax.conv_general_dilated(
            x.astype(conv_dtype), w.astype(conv_dtype),
            window_strides=(1, 1), padding="SAME",
            dimension_numbers=("NCHW", "OIHW", "NCHW"),
            preferred_element_type=jnp.float32)
        return jnp.maximum(y + b[None, :, None, None], 0.0)

    return step(step(x_nchw, w1, bn1), w2, bn2)


if __name__ == "__main__":
    key = jax.random.PRNGKey(0)
    kx, kp = jax.random.split(key)

    N, Cin, H, W = 2, 4, 16, 16
    Cout = 8
    x = jax.random.normal(kx, (N, Cin, H, W), jnp.float32)  # NCHW, PyTorch-like
    params = init_double_conv_params(kp, Cin, Cout)

    ref_f32 = ref_forward(x, params, conv_dtype=jnp.float32)
    ref_bf16 = ref_forward(x, params, conv_dtype=jnp.bfloat16)

    # Default path: bf16 MXU operands, f32 accumulation, f32 output,
    # batch_block chosen to keep the grid length >= 2 (v7x-friendly).
    out = jax.block_until_ready(jax.jit(double_conv_forward)(x, params))
    assert out.shape == (N, Cout, H, W)
    err_bf16 = float(jnp.max(jnp.abs(out - ref_bf16)))
    assert jnp.allclose(out, ref_bf16, atol=2e-2, rtol=2e-2), err_bf16
    err_f32 = float(jnp.max(jnp.abs(out - ref_f32)))
    assert jnp.allclose(out, ref_f32, atol=2e-1, rtol=1e-1), err_f32

    # Batched-M path (both elements in one grid step) + bf16 HBM output
    # (v5e writeback saving).  Exercises B > 1 stacking/halo logic.
    out_b = jax.block_until_ready(
        jax.jit(functools.partial(double_conv_forward, batch_block=2,
                                  out_dtype=jnp.bfloat16))(x, params))
    out_b32 = out_b.astype(jnp.float32)
    err_b = float(jnp.max(jnp.abs(out_b32 - ref_bf16)))
    assert jnp.allclose(out_b32, ref_bf16, atol=4e-2, rtol=4e-2), err_b

    # Strict check of the kernel structure with f32 matmuls.
    out_f32 = jax.block_until_ready(
        jax.jit(functools.partial(double_conv_forward,
                                  compute_dtype=jnp.float32))(x, params))
    assert jnp.allclose(out_f32, ref_f32, atol=1e-4, rtol=1e-4), \
        float(jnp.max(jnp.abs(out_f32 - ref_f32)))

    print("KERNEL_OK")
</pallas_src>

<mosaic_0001>
module attributes {stable_mosaic.version = 11 : i64} {
  func.func @double_conv_kernel(%arg0: i32, %arg1: memref<1x16x64xbf16, #tpu.memory_space<vmem>>, %arg2: memref<3x64x128xbf16, #tpu.memory_space<vmem>>, %arg3: memref<3x128x128xbf16, #tpu.memory_space<vmem>>, %arg4: memref<1x128xf32, #tpu.memory_space<vmem>>, %arg5: memref<1x128xf32, #tpu.memory_space<vmem>>, %arg6: memref<1x16x128xf32, #tpu.memory_space<vmem>>, %arg7: memref<18x64xbf16, #tpu.memory_space<vmem>>, %arg8: memref<18x128xbf16, #tpu.memory_space<vmem>>) attributes {dimension_semantics = [#tpu.dimension_semantics<parallel>], iteration_bounds = array<i64: 2>, scalar_prefetch = 0 : i64, scratch_operands = 2 : i64, tpu.core_type = #tpu.core_type<tc>, window_params = [{transform_indices = @transform_0, window_bounds = array<i64: 1, 16, 64>}, {pipeline_mode = #tpu.pipeline_mode<synchronous>, transform_indices = @transform_1, window_bounds = array<i64: 3, 64, 128>}, {pipeline_mode = #tpu.pipeline_mode<synchronous>, transform_indices = @transform_2, window_bounds = array<i64: 3, 128, 128>}, {pipeline_mode = #tpu.pipeline_mode<synchronous>, transform_indices = @transform_3, window_bounds = array<i64: 1, 128>}, {pipeline_mode = #tpu.pipeline_mode<synchronous>, transform_indices = @transform_4, window_bounds = array<i64: 1, 128>}, {transform_indices = @transform_5, window_bounds = array<i64: 1, 16, 128>}]} {
    %cst = arith.constant 0.000000e+00 : bf16
    %0 = vector.broadcast %cst : bf16 to vector<1x64xbf16>
    %c0 = arith.constant 0 : index
    %c0_0 = arith.constant 0 : index
    %1 = vector.load %arg7[%c0, %c0_0] : memref<18x64xbf16, #tpu.memory_space<vmem>>, vector<1x64xbf16>
    tpu.vector_store %arg7[%c0, %c0_0], %0 {strides = array<i32>} : memref<18x64xbf16, #tpu.memory_space<vmem>>, vector<1x64xbf16>,
    %c17 = arith.constant 17 : index
    %c0_1 = arith.constant 0 : index
    %2 = vector.load %arg7[%c17, %c0_1] : memref<18x64xbf16, #tpu.memory_space<vmem>>, vector<1x64xbf16>
    tpu.vector_store %arg7[%c17, %c0_1], %0 {strides = array<i32>} : memref<18x64xbf16, #tpu.memory_space<vmem>>, vector<1x64xbf16>,
    %c0_2 = arith.constant 0 : index
    %c0_3 = arith.constant 0 : index
    %c0_4 = arith.constant 0 : index
    %3 = vector.load %arg1[%c0_2, %c0_3, %c0_4] : memref<1x16x64xbf16, #tpu.memory_space<vmem>>, vector<1x16x64xbf16>
    %4 = vector.shape_cast %3 : vector<1x16x64xbf16> to vector<16x64xbf16>
    %c1 = arith.constant 1 : index
    %c0_5 = arith.constant 0 : index
    %5 = vector.load %arg7[%c1, %c0_5] : memref<18x64xbf16, #tpu.memory_space<vmem>>, vector<16x64xbf16>
    tpu.vector_store %arg7[%c1, %c0_5], %4 {strides = array<i32>} : memref<18x64xbf16, #tpu.memory_space<vmem>>, vector<16x64xbf16>,
    %c0_6 = arith.constant 0 : index
    %c0_7 = arith.constant 0 : index
    %6 = vector.load %arg7[%c0_6, %c0_7] : memref<18x64xbf16, #tpu.memory_space<vmem>>, vector<16x64xbf16>
    %c0_8 = arith.constant 0 : index
    %c0_9 = arith.constant 0 : index
    %c0_10 = arith.constant 0 : index
    %7 = vector.load %arg2[%c0_8, %c0_9, %c0_10] : memref<3x64x128xbf16, #tpu.memory_space<vmem>>, vector<1x64x128xbf16>
    %8 = vector.shape_cast %7 : vector<1x64x128xbf16> to vector<64x128xbf16>
    %cst_11 = arith.constant dense<0.000000e+00> : vector<16x128xf32>
    %9 = tpu.matmul %6, %8, %cst_11 {dimension_numbers = #tpu.dot_dimension_numbers<[1], [0], [0], [1], [0, 0, 1, 1], [], []>} : vector<16x64xbf16>, vector<64x128xbf16>, vector<16x128xf32> -> vector<16x128xf32>
    %c1_12 = arith.constant 1 : index
    %c0_13 = arith.constant 0 : index
    %10 = vector.load %arg7[%c1_12, %c0_13] : memref<18x64xbf16, #tpu.memory_space<vmem>>, vector<16x64xbf16>
    %c1_14 = arith.constant 1 : index
    %c0_15 = arith.constant 0 : index
    %c0_16 = arith.constant 0 : index
    %11 = vector.load %arg2[%c1_14, %c0_15, %c0_16] : memref<3x64x128xbf16, #tpu.memory_space<vmem>>, vector<1x64x128xbf16>
    %12 = vector.shape_cast %11 : vector<1x64x128xbf16> to vector<64x128xbf16>
    %cst_17 = arith.constant dense<0.000000e+00> : vector<16x128xf32>
    %13 = tpu.matmul %10, %12, %cst_17 {dimension_numbers = #tpu.dot_dimension_numbers<[1], [0], [0], [1], [0, 0, 1, 1], [], []>} : vector<16x64xbf16>, vector<64x128xbf16>, vector<16x128xf32> -> vector<16x128xf32>
    %14 = arith.addf %9, %13 : vector<16x128xf32>
    %c2 = arith.constant 2 : index
    %c0_18 = arith.constant 0 : index
    %15 = vector.load %arg7[%c2, %c0_18] : memref<18x64xbf16, #tpu.memory_space<vmem>>, vector<16x64xbf16>
    %c2_19 = arith.constant 2 : index
    %c0_20 = arith.constant 0 : index
    %c0_21 = arith.constant 0 : index
    %16 = vector.load %arg2[%c2_19, %c0_20, %c0_21] : memref<3x64x128xbf16, #tpu.memory_space<vmem>>, vector<1x64x128xbf16>
    %17 = vector.shape_cast %16 : vector<1x64x128xbf16> to vector<64x128xbf16>
    %cst_22 = arith.constant dense<0.000000e+00> : vector<16x128xf32>
    %18 = tpu.matmul %15, %17, %cst_22 {dimension_numbers = #tpu.dot_dimension_numbers<[1], [0], [0], [1], [0, 0, 1, 1], [], []>} : vector<16x64xbf16>, vector<64x128xbf16>, vector<16x128xf32> -> vector<16x128xf32>
    %19 = arith.addf %14, %18 : vector<16x128xf32>
    %c0_23 = arith.constant 0 : index
    %c0_24 = arith.constant 0 : index
    %20 = vector.load %arg4[%c0_23, %c0_24] : memref<1x128xf32, #tpu.memory_space<vmem>>, vector<1x128xf32>
    %21 = vector.broadcast %20 : vector<1x128xf32> to vector<16x128xf32>
    %22 = arith.addf %19, %21 : vector<16x128xf32>
    %cst_25 = arith.constant 0.000000e+00 : f32
    %23 = vector.broadcast %cst_25 : f32 to vector<16x128xf32>
    %24 = arith.maximumf %22, %23 : vector<16x128xf32>
    %25 = arith.truncf %24 : vector<16x128xf32> to vector<16x128xbf16>
    %c1_26 = arith.constant 1 : index
    %c0_27 = arith.constant 0 : index
    %26 = vector.load %arg8[%c1_26, %c0_27] : memref<18x128xbf16, #tpu.memory_space<vmem>>, vector<16x128xbf16>
    tpu.vector_store %arg8[%c1_26, %c0_27], %25 {strides = array<i32>} : memref<18x128xbf16, #tpu.memory_space<vmem>>, vector<16x128xbf16>,
    %cst_28 = arith.constant 0.000000e+00 : bf16
    %27 = vector.broadcast %cst_28 : bf16 to vector<1x128xbf16>
    %c0_29 = arith.constant 0 : index
    %c0_30 = arith.constant 0 : index
    %28 = vector.load %arg8[%c0_29, %c0_30] : memref<18x128xbf16, #tpu.memory_space<vmem>>, vector<1x128xbf16>
    tpu.vector_store %arg8[%c0_29, %c0_30], %27 {strides = array<i32>} : memref<18x128xbf16, #tpu.memory_space<vmem>>, vector<1x128xbf16>,
    %c17_31 = arith.constant 17 : index
    %c0_32 = arith.constant 0 : index
    %29 = vector.load %arg8[%c17_31, %c0_32] : memref<18x128xbf16, #tpu.memory_space<vmem>>, vector<1x128xbf16>
    tpu.vector_store %arg8[%c17_31, %c0_32], %27 {strides = array<i32>} : memref<18x128xbf16, #tpu.memory_space<vmem>>, vector<1x128xbf16>,
    %c0_33 = arith.constant 0 : index
    %c0_34 = arith.constant 0 : index
    %30 = vector.load %arg8[%c0_33, %c0_34] : memref<18x128xbf16, #tpu.memory_space<vmem>>, vector<16x128xbf16>
    %c0_35 = arith.constant 0 : index
    %c0_36 = arith.constant 0 : index
    %c0_37 = arith.constant 0 : index
    %31 = vector.load %arg3[%c0_35, %c0_36, %c0_37] : memref<3x128x128xbf16, #tpu.memory_space<vmem>>, vector<1x128x128xbf16>
    %32 = vector.shape_cast %31 : vector<1x128x128xbf16> to vector<128x128xbf16>
    %cst_38 = arith.constant dense<0.000000e+00> : vector<16x128xf32>
    %33 = tpu.matmul %30, %32, %cst_38 {dimension_numbers = #tpu.dot_dimension_numbers<[1], [0], [0], [1], [0, 0, 1, 1], [], []>} : vector<16x128xbf16>, vector<128x128xbf16>, vector<16x128xf32> -> vector<16x128xf32>
    %c1_39 = arith.constant 1 : index
    %c0_40 = arith.constant 0 : index
    %34 = vector.load %arg8[%c1_39, %c0_40] : memref<18x128xbf16, #tpu.memory_space<vmem>>, vector<16x128xbf16>
    %c1_41 = arith.constant 1 : index
    %c0_42 = arith.constant 0 : index
    %c0_43 = arith.constant 0 : index
    %35 = vector.load %arg3[%c1_41, %c0_42, %c0_43] : memref<3x128x128xbf16, #tpu.memory_space<vmem>>, vector<1x128x128xbf16>
    %36 = vector.shape_cast %35 : vector<1x128x128xbf16> to vector<128x128xbf16>
    %cst_44 = arith.constant dense<0.000000e+00> : vector<16x128xf32>
    %37 = tpu.matmul %34, %36, %cst_44 {dimension_numbers = #tpu.dot_dimension_numbers<[1], [0], [0], [1], [0, 0, 1, 1], [], []>} : vector<16x128xbf16>, vector<128x128xbf16>, vector<16x128xf32> -> vector<16x128xf32>
    %38 = arith.addf %33, %37 : vector<16x128xf32>
    %c2_45 = arith.constant 2 : index
    %c0_46 = arith.constant 0 : index
    %39 = vector.load %arg8[%c2_45, %c0_46] : memref<18x128xbf16, #tpu.memory_space<vmem>>, vector<16x128xbf16>
    %c2_47 = arith.constant 2 : index
    %c0_48 = arith.constant 0 : index
    %c0_49 = arith.constant 0 : index
    %40 = vector.load %arg3[%c2_47, %c0_48, %c0_49] : memref<3x128x128xbf16, #tpu.memory_space<vmem>>, vector<1x128x128xbf16>
    %41 = vector.shape_cast %40 : vector<1x128x128xbf16> to vector<128x128xbf16>
    %cst_50 = arith.constant dense<0.000000e+00> : vector<16x128xf32>
    %42 = tpu.matmul %39, %41, %cst_50 {dimension_numbers = #tpu.dot_dimension_numbers<[1], [0], [0], [1], [0, 0, 1, 1], [], []>} : vector<16x128xbf16>, vector<128x128xbf16>, vector<16x128xf32> -> vector<16x128xf32>
    %43 = arith.addf %38, %42 : vector<16x128xf32>
    %c0_51 = arith.constant 0 : index
    %c0_52 = arith.constant 0 : index
    %44 = vector.load %arg5[%c0_51, %c0_52] : memref<1x128xf32, #tpu.memory_space<vmem>>, vector<1x128xf32>
    %45 = vector.broadcast %44 : vector<1x128xf32> to vector<16x128xf32>
    %46 = arith.addf %43, %45 : vector<16x128xf32>
    %cst_53 = arith.constant 0.000000e+00 : f32
    %47 = vector.broadcast %cst_53 : f32 to vector<16x128xf32>
    %48 = arith.maximumf %46, %47 : vector<16x128xf32>
    %c0_54 = arith.constant 0 : index
    %c0_55 = arith.constant 0 : index
    %c0_56 = arith.constant 0 : index
    %49 = vector.load %arg6[%c0_54, %c0_55, %c0_56] : memref<1x16x128xf32, #tpu.memory_space<vmem>>, vector<1x16x128xf32>
    %50 = vector.shape_cast %49 : vector<1x16x128xf32> to vector<16x128xf32>
    %51 = vector.shape_cast %48 : vector<16x128xf32> to vector<1x16x128xf32>
    tpu.vector_store %arg6[%c0_54, %c0_55, %c0_56], %51 {strides = array<i32>} : memref<1x16x128xf32, #tpu.memory_space<vmem>>, vector<1x16x128xf32>,
    return
  }
  func.func @transform_0(%arg0: i32) -> (i32, i32, i32) {
    %c0_i32 = arith.constant 0 : i32
    %c0_i32_0 = arith.constant 0 : i32
    %c0_i32_1 = arith.constant 0 : i32
    return %arg0, %c0_i32, %c0_i32_0 : i32, i32, i32
  }
  func.func @transform_1(%arg0: i32) -> (i32, i32, i32) {
    %c0_i32 = arith.constant 0 : i32
    %c0_i32_0 = arith.constant 0 : i32
    %c0_i32_1 = arith.constant 0 : i32
    %c0_i32_2 = arith.constant 0 : i32
    return %c0_i32, %c0_i32_0, %c0_i32_1 : i32, i32, i32
  }
  func.func @transform_2(%arg0: i32) -> (i32, i32, i32) {
    %c0_i32 = arith.constant 0 : i32
    %c0_i32_0 = arith.constant 0 : i32
    %c0_i32_1 = arith.constant 0 : i32
    %c0_i32_2 = arith.constant 0 : i32
    return %c0_i32, %c0_i32_0, %c0_i32_1 : i32, i32, i32
  }
  func.func @transform_3(%arg0: i32) -> (i32, i32) {
    %c0_i32 = arith.constant 0 : i32
    %c0_i32_0 = arith.constant 0 : i32
    %c0_i32_1 = arith.constant 0 : i32
    return %c0_i32, %c0_i32_0 : i32, i32
  }
  func.func @transform_4(%arg0: i32) -> (i32, i32) {
    %c0_i32 = arith.constant 0 : i32
    %c0_i32_0 = arith.constant 0 : i32
    %c0_i32_1 = arith.constant 0 : i32
    return %c0_i32, %c0_i32_0 : i32, i32
  }
  func.func @transform_5(%arg0: i32) -> (i32, i32, i32) {
    %c0_i32 = arith.constant 0 : i32
    %c0_i32_0 = arith.constant 0 : i32
    %c0_i32_1 = arith.constant 0 : i32
    return %arg0, %c0_i32, %c0_i32_0 : i32, i32, i32
  }
}

</mosaic_0001>

<llo_original>
// kernel: tile.13
$region0: #{tile.13}
  #allocation0 [shape = 's32[1]{0}', space=sflag, size = 0x4, scoped, tag = 'scoped memory for tile.13']
  %s0 = inlined_call_operand.vmem [shape: f32[8], index: 0, kind: input, shape index: {}]
  %s1 = inlined_call_operand.vmem [shape: f32[16,8], index: 1, kind: output, shape index: {}]
  // Predicated region
  $region2: #{tile.13} parent=0 // pred_check
    _
  $region3: #{tile.13} parent=0 // pred_check_branch
    %3 = sbr.rel (0) target = $region5
  $region4: #{tile.13} parent=0 // pred_region
    _
  $region5: #{tile.13} parent=0 // pred_fallthru
    _
  %v4 = vld [vmem:[%s0] ss:$0 sm:$0xff]
  %5 = vst [vmem:[%s1] sm:$0xff] %v4
  %s6 = scalar_lea.vmem %s1, 8
  %7 = vst [vmem:[%s6] sm:$0xff] %v4

// kernel: tile.14
$region0: #{tile.14}
  %s0 = inlined_call_operand.vmem [shape: f32[16,8], index: 0, kind: input, shape index: {}]
  %s1 = inlined_call_operand.vmem [shape: f32[1,128], index: 1, kind: output, shape index: {}]
  $region1: #{tile.14} parent=0
    #allocation0 [shape = 'u8[4096]{0}', space=vmem, size = 0x1000, scoped, tag = 'scoped mem for output reshape']
    %v2 = vld [vmem:[%s0] sm:$0x1]
    %vm3 = vcmask 64512
    %4 = vst.msk [vmem:[#allocation0] sm:$0x1] %vm3, %v2
    %s5 = scalar_lea.vmem %s0, 15
    %v6 = vld [vmem:[%s5] sm:$0x1]
    %7 = vrot.lane.b32.xlu0 %v6, 120
    %v8 = vpop.permute.xlu0 %7
    %vm9 = vcmask 1048512
    %10 = vst.msk [vmem:[#allocation0] sm:$0x1] %vm9, %v8
    %s11 = scalar_lea.vmem %s0, 14
    %v12 = vld [vmem:[%s11] sm:$0x1]
    %13 = vrot.lane.b32.xlu0 %v12, 112
    %v14 = vpop.permute.xlu0 %13
    %vm15 = vcmask 982912
    %16 = vst.msk [vmem:[#allocation0] sm:$0x1] %vm15, %v14
    %s17 = scalar_lea.vmem %s0, 13
    %v18 = vld [vmem:[%s17] sm:$0x1]
    %19 = vrot.lane.b32.xlu0 %v18, 104
    %v20 = vpop.permute.xlu0 %19
    %vm21 = vcmask 917312
    %22 = vst.msk [vmem:[#allocation0] sm:$0x1] %vm21, %v20
    %s23 = scalar_lea.vmem %s0, 12
    %v24 = vld [vmem:[%s23] sm:$0x1]
    %25 = vrot.lane.b32.xlu0 %v24, 96
    %v26 = vpop.permute.xlu0 %25
    %vm27 = vcmask 851712
    %28 = vst.msk [vmem:[#allocation0] sm:$0x1] %vm27, %v26
    %s29 = scalar_lea.vmem %s0, 11
    %v30 = vld [vmem:[%s29] sm:$0x1]
    %31 = vrot.lane.b32.xlu0 %v30, 88
    %v32 = vpop.permute.xlu0 %31
    %vm33 = vcmask 786112
    %34 = vst.msk [vmem:[#allocation0] sm:$0x1] %vm33, %v32
    %s35 = scalar_lea.vmem %s0, 10
    %v36 = vld [vmem:[%s35] sm:$0x1]
    %37 = vrot.lane.b32.xlu0 %v36, 80
    %v38 = vpop.permute.xlu0 %37
    %vm39 = vcmask 720512
    %40 = vst.msk [vmem:[#allocation0] sm:$0x1] %vm39, %v38
    %s41 = scalar_lea.vmem %s0, 9
    %v42 = vld [vmem:[%s41] sm:$0x1]
    %43 = vrot.lane.b32.xlu0 %v42, 72
    %v44 = vpop.permute.xlu0 %43
    %vm45 = vcmask 654912
    %46 = vst.msk [vmem:[#allocation0] sm:$0x1] %vm45, %v44
    %s47 = scalar_lea.vmem %s0, 8
    %v48 = vld [vmem:[%s47] sm:$0x1]
    %49 = vrot.lane.b32.xlu0 %v48, 64
    %v50 = vpop.permute.xlu0 %49
    %vm51 = vcmask 589312
    %52 = vst.msk [vmem:[#allocation0] sm:$0x1] %vm51, %v50
    %s53 = scalar_lea.vmem %s0, 7
    %v54 = vld [vmem:[%s53] sm:$0x1]
    %55 = vrot.lane.b32.xlu0 %v54, 56
    %v56 = vpop.permute.xlu0 %55
    %vm57 = vcmask 523712
    %58 = vst.msk [vmem:[#allocation0] sm:$0x1] %vm57, %v56
    %s59 = scalar_lea.vmem %s0, 6
    %v60 = vld [vmem:[%s59] sm:$0x1]
    %61 = vrot.lane.b32.xlu0 %v60, 48
    %v62 = vpop.permute.xlu0 %61
    %vm63 = vcmask 458112
    %64 = vst.msk [vmem:[#allocation0] sm:$0x1] %vm63, %v62
    %s65 = scalar_lea.vmem %s0, 5
    %v66 = vld [vmem:[%s65] sm:$0x1]
    %67 = vrot.lane.b32.xlu0 %v66, 40
    %v68 = vpop.permute.xlu0 %67
    %vm69 = vcmask 392512
    %70 = vst.msk [vmem:[#allocation0] sm:$0x1] %vm69, %v68
    %s71 = scalar_lea.vmem %s0, 4
    %v72 = vld [vmem:[%s71] sm:$0x1]
    %73 = vrot.lane.b32.xlu0 %v72, 32
    %v74 = vpop.permute.xlu0 %73
    %vm75 = vcmask 326912
    %76 = vst.msk [vmem:[#allocation0] sm:$0x1] %vm75, %v74
    %s77 = scalar_lea.vmem %s0, 3
    %v78 = vld [vmem:[%s77] sm:$0x1]
    %79 = vrot.lane.b32.xlu0 %v78, 24
    %v80 = vpop.permute.xlu0 %79
    %vm81 = vcmask 261312
    %82 = vst.msk [vmem:[#allocation0] sm:$0x1] %vm81, %v80
    %s83 = scalar_lea.vmem %s0, 2
    %v84 = vld [vmem:[%s83] sm:$0x1]
    %85 = vrot.lane.b32.xlu0 %v84, 16
    %v86 = vpop.permute.xlu0 %85
    %vm87 = vcmask 195712
    %88 = vst.msk [vmem:[#allocation0] sm:$0x1] %vm87, %v86
    %s89 = scalar_lea.vmem %s0, 1
    %v90 = vld [vmem:[%s89] sm:$0x1]
    %91 = vrot.lane.b32.xlu0 %v90, 8
    %v92 = vpop.permute.xlu0 %91
    %vm93 = vcmask 130112
    %94 = vst.msk [vmem:[#allocation0] sm:$0x1] %vm93, %v92
    %s96 = ssub.s32 2, 1
    %v97 = vld [vmem:[#allocation0] sm:%s96]
    %s99 = ssub.s32 2, 1
    %100 = vst [vmem:[%s1] sm:%s99] %v97

// kernel: double_conv_forward.1
$region0: #{double_conv_forward.1}
  #allocation0 [shape = 'u32[]', space=smem, size = 0x4, offset = 0x4, fixed_abs, tag = 'smem constant byte address 0x4 - core index']
  #allocation1 [shape = 'u32[72,128]{1,0:T(1,128)}', space=vmem, size = 0x9000, scoped, tag = 'internal scratch']
  #allocation2 [shape = 'bf16[18,64]{1,0:T(8,128)(2,1)}', space=vmem, size = 0x1800, scoped, tag = 'scratch operand']
  #allocation3 [shape = 'bf16[18,128]{1,0:T(8,128)(2,1)}', space=vmem, size = 0x1800, scoped, tag = 'scratch operand']
  %s0 = inlined_call_operand.vmem [shape: bf16[2,16,64], index: 0, kind: input, shape index: {}]
  %s1 = inlined_call_operand.vmem [shape: bf16[3,64,128], index: 1, kind: input, shape index: {}]
  %s2 = inlined_call_operand.vmem [shape: bf16[3,128,128], index: 2, kind: input, shape index: {}]
  %s3 = inlined_call_operand.vmem [shape: f32[1,128], index: 3, kind: input, shape index: {}]
  %s4 = inlined_call_operand.vmem [shape: f32[1,128], index: 4, kind: input, shape index: {}]
  %s5 = inlined_call_operand.vmem [shape: f32[2,16,128], index: 5, kind: output, shape index: {}]
  %s6 = sld [smem:[#allocation0]]
  $region53: #{double_conv_forward.1} parent=0
    _
  %s8 = ssub.s32 1, %s6
  %s9 = scalar_select 0, %s8, %s6
  loop: start=0, step=1, limit=4
  $region2: #{double_conv_forward.1} parent=0 // loop_pre_header
    _
  $region3: #{double_conv_forward.1} parent=0 // loop_header
    %s11 = sphi 0, %s15
    %p12 = scmp.ge.s32.totalorder %s11, 4
    %s21 = sphi 0, %s23
    %s24 = sphi 0, %s21
    %s25 = sphi 0, %s24
    %s41 = sphi 0, %s25
    %s45 = sphi 0, %s45
    %s47 = sphi 0, %s45
    %s48 = sphi 0, %s47
    %s62 = sphi 0, %s48
    %s66 = sphi 0, %s66
    %s68 = sphi 0, %s66
    %s69 = sphi 0, %s68
    %s83 = sphi 0, %s69
    %s87 = sphi 0, %s87
    %s89 = sphi 0, %s87
    %s90 = sphi 0, %s89
    %s104 = sphi 0, %s90
    %s108 = sphi 0, %s108
    %s110 = sphi 0, %s108
    %s111 = sphi 0, %s110
    %s125 = sphi 0, %s111
    %s131 = sphi 0, %s133
    %s134 = sphi 0, %s131
    %s135 = sphi 0, %s134
    %s151 = sphi 0, %s135
  $region4: #{double_conv_forward.1} parent=0 // loop_header_branch
    %14 = sbr.rel (%p12) target = $region8
  $region5: #{double_conv_forward.1} parent=0 // loop_body
    %s16 = ssub.s32 %s11, 1
    %s17 = ssub.s32 %s11, 2
    %s18 = sadd.s32 %s11, 1
    %s19 = ssub.s32 %s11, %s18
    %p20 = scmp.eq.s32.totalorder %s19, 0
    %s22 = sadd.s32 %s21, 1
    %s23 = scalar_select %p20, %s21, %s22
    %p26 = pneg %p20
    %p27 = scmp.eq.s32.totalorder %s11, 1
    %p28 = por %p26, %p27
    %p29 = scmp.ne.s32.totalorder %s21, %s24
    %p30 = scmp.eq.s32.totalorder %s11, 0
    %p31 = por %p29, %p30
    %p32 = scmp.ne.s32.totalorder %s21, %s24
    %p33 = scmp.eq.s32.totalorder %s16, 1
    %p34 = por %p32, %p33
    %p35 = scmp.ne.s32.totalorder %s24, %s25
    %p36 = scmp.eq.s32.totalorder %s16, 0
    %p37 = por %p35, %p36
    %p38 = scmp.ne.s32.totalorder %s24, %s25
    %p39 = scmp.eq.s32.totalorder %s17, 1
    %p40 = por %p38, %p39
    %p42 = scmp.ne.s32.totalorder %s25, %s41
    %p43 = scmp.eq.s32.totalorder %s17, 0
    %p44 = por %p42, %p43
    %s46 = sadd.s32 %s45, 1
    %p49 = scmp.eq.s32.totalorder %s11, 1
    %p50 = scmp.ne.s32.totalorder %s45, %s47
    %p51 = scmp.eq.s32.totalorder %s11, 0
    %p52 = por %p50, %p51
    %p53 = scmp.ne.s32.totalorder %s45, %s47
    %p54 = scmp.eq.s32.totalorder %s16, 1
    %p55 = por %p53, %p54
    %p56 = scmp.ne.s32.totalorder %s47, %s48
    %p57 = scmp.eq.s32.totalorder %s16, 0
    %p58 = por %p56, %p57
    %p59 = scmp.ne.s32.totalorder %s47, %s48
    %p60 = scmp.eq.s32.totalorder %s17, 1
    %p61 = por %p59, %p60
    %p63 = scmp.ne.s32.totalorder %s48, %s62
    %p64 = scmp.eq.s32.totalorder %s17, 0
    %p65 = por %p63, %p64
    %s67 = sadd.s32 %s66, 1
    %p70 = scmp.eq.s32.totalorder %s11, 1
    %p71 = scmp.ne.s32.totalorder %s66, %s68
    %p72 = scmp.eq.s32.totalorder %s11, 0
    %p73 = por %p71, %p72
    %p74 = scmp.ne.s32.totalorder %s66, %s68
    %p75 = scmp.eq.s32.totalorder %s16, 1
    %p76 = por %p74, %p75
    %p77 = scmp.ne.s32.totalorder %s68, %s69
    %p78 = scmp.eq.s32.totalorder %s16, 0
    %p79 = por %p77, %p78
    %p80 = scmp.ne.s32.totalorder %s68, %s69
    %p81 = scmp.eq.s32.totalorder %s17, 1
    %p82 = por %p80, %p81
    %p84 = scmp.ne.s32.totalorder %s69, %s83
    %p85 = scmp.eq.s32.totalorder %s17, 0
    %p86 = por %p84, %p85
    %s88 = sadd.s32 %s87, 1
    %p91 = scmp.eq.s32.totalorder %s11, 1
    %p92 = scmp.ne.s32.totalorder %s87, %s89
    %p93 = scmp.eq.s32.totalorder %s11, 0
    %p94 = por %p92, %p93
    %p95 = scmp.ne.s32.totalorder %s87, %s89
    %p96 = scmp.eq.s32.totalorder %s16, 1
    %p97 = por %p95, %p96
    %p98 = scmp.ne.s32.totalorder %s89, %s90
    %p99 = scmp.eq.s32.totalorder %s16, 0
    %p100 = por %p98, %p99
    %p101 = scmp.ne.s32.totalorder %s89, %s90
    %p102 = scmp.eq.s32.totalorder %s17, 1
    %p103 = por %p101, %p102
    %p105 = scmp.ne.s32.totalorder %s90, %s104
    %p106 = scmp.eq.s32.totalorder %s17, 0
    %p107 = por %p105, %p106
    %s109 = sadd.s32 %s108, 1
    %p112 = scmp.eq.s32.totalorder %s11, 1
    %p113 = scmp.ne.s32.totalorder %s108, %s110
    %p114 = scmp.eq.s32.totalorder %s11, 0
    %p115 = por %p113, %p114
    %p116 = scmp.ne.s32.totalorder %s108, %s110
    %p117 = scmp.eq.s32.totalorder %s16, 1
    %p118 = por %p116, %p117
    %p119 = scmp.ne.s32.totalorder %s110, %s111
    %p120 = scmp.eq.s32.totalorder %s16, 0
    %p121 = por %p119, %p120
    %p122 = scmp.ne.s32.totalorder %s110, %s111
    %p123 = scmp.eq.s32.totalorder %s17, 1
    %p124 = por %p122, %p123
    %p126 = scmp.ne.s32.totalorder %s111, %s125
    %p127 = scmp.eq.s32.totalorder %s17, 0
    %p128 = por %p126, %p127
    %s129 = ssub.s32 %s11, %s18
    %p130 = scmp.eq.s32.totalorder %s129, 0
    %s132 = sadd.s32 %s131, 1
    %s133 = scalar_select %p130, %s131, %s132
    %p136 = pneg %p130
    %p137 = scmp.eq.s32.totalorder %s11, 1
    %p138 = por %p136, %p137
    %p139 = scmp.ne.s32.totalorder %s131, %s134
    %p140 = scmp.eq.s32.totalorder %s11, 0
    %p141 = por %p139, %p140
    %p142 = scmp.ne.s32.totalorder %s131, %s134
    %p143 = scmp.eq.s32.totalorder %s16, 1
    %p144 = por %p142, %p143
    %p145 = scmp.ne.s32.totalorder %s134, %s135
    %p146 = scmp.eq.s32.totalorder %s16, 0
    %p147 = por %p145, %p146
    %p148 = scmp.ne.s32.totalorder %s134, %s135
    %p149 = scmp.eq.s32.totalorder %s17, 1
    %p150 = por %p148, %p149
    %p152 = scmp.ne.s32.totalorder %s135, %s151
    %p153 = scmp.eq.s32.totalorder %s17, 0
    %p154 = por %p152, %p153
    %p155 = scmp.le.s32.totalorder 1, %s11
    %p156 = scmp.lt.s32.totalorder %s11, 3
    %p157 = pnand %p155, %p156
    %p158 = pneg %p157
    // Predicated region
    $region9: #{double_conv_forward.1} parent=5 // pred_check
      _
    $region10: #{double_conv_forward.1} parent=5 // pred_check_branch
      %160 = sbr.rel (%p157) target = $region12
    $region11: #{double_conv_forward.1} parent=5 // pred_region
      %s161 = ssub.s32 %s11, 1
      // Predicated region
      $region13: #{double_conv_forward.1} parent=11 // pred_check
        %p162 = pneg %p58
      $region14: #{double_conv_forward.1} parent=11 // pred_check_branch
        %164 = sbr.rel (%p162) target = $region16
      $region15: #{double_conv_forward.1} parent=11 // pred_region
        _
      $region16: #{double_conv_forward.1} parent=11 // pred_fallthru
        _
      // Predicated region
      $region17: #{double_conv_forward.1} parent=11 // pred_check
        %p165 = pneg %p79
      $region18: #{double_conv_forward.1} parent=11 // pred_check_branch
        %167 = sbr.rel (%p165) target = $region20
      $region19: #{double_conv_forward.1} parent=11 // pred_region
        _
      $region20: #{double_conv_forward.1} parent=11 // pred_fallthru
        _
      // Predicated region
      $region21: #{double_conv_forward.1} parent=11 // pred_check
        %p168 = pneg %p100
      $region22: #{double_conv_forward.1} parent=11 // pred_check_branch
        %170 = sbr.rel (%p168) target = $region24
      $region23: #{double_conv_forward.1} parent=11 // pred_region
        _
      $region24: #{double_conv_forward.1} parent=11 // pred_fallthru
        _
      // Predicated region
      $region25: #{double_conv_forward.1} parent=11 // pred_check
        %p171 = pneg %p121
      $region26: #{double_conv_forward.1} parent=11 // pred_check_branch
        %173 = sbr.rel (%p171) target = $region28
      $region27: #{double_conv_forward.1} parent=11 // pred_region
        _
      $region28: #{double_conv_forward.1} parent=11 // pred_fallthru
        _
    $region12: #{double_conv_forward.1} parent=5 // pred_fallthru
      _
    %p174 = scmp.lt.s32.totalorder %s11, 2
    // Predicated region
    $region29: #{double_conv_forward.1} parent=5 // pred_check
      %p175 = pneg %p174
    $region30: #{double_conv_forward.1} parent=5 // pred_check_branch
      %177 = sbr.rel (%p175) target = $region32
    $region31: #{double_conv_forward.1} parent=5 // pred_region
      // Predicated region
      $region33: #{double_conv_forward.1} parent=31 // pred_check
        %p178 = pneg %p31
      $region34: #{double_conv_forward.1} parent=31 // pred_check_branch
        %180 = sbr.rel (%p178) target = $region36
      $region35: #{double_conv_forward.1} parent=31 // pred_region
        %p181 = scmp.lt.s32.totalorder %s11, 1
        %s182 = scalar_select %p181, %s11, 1
        %s183 = smul.addr %s182, 2
        %s184 = smul.addr %s183, 4
        %s185 = scalar_lea.vmem %s0, %s184
      $region36: #{double_conv_forward.1} parent=31 // pred_fallthru
        _
    $region32: #{double_conv_forward.1} parent=5 // pred_fallthru
      _
    %p186 = scmp.le.s32.totalorder 1, %s11
    %p187 = scmp.lt.s32.totalorder %s11, 3
    %p188 = pnand %p186, %p187
    %p189 = pneg %p188
    // Predicated region
    $region37: #{double_conv_forward.1} parent=5 // pred_check
      _
    $region38: #{double_conv_forward.1} parent=5 // pred_check_branch
      %191 = sbr.rel (%p188) target = $region40
    $region39: #{double_conv_forward.1} parent=5 // pred_region
      %s192 = ssub.s32 %s11, 1
      %p193 = scmp.lt.s32.totalorder %s16, 1
      %s194 = scalar_select %p193, %s16, 1
      %s195 = smul.addr %s194, 2
      %s196 = smul.addr %s195, 4
      %s197 = scalar_lea.vmem %s0, %s196
      %p198 = pneg %p37
      %p199 = pneg %p34
      %p200 = pneg %p58
      %p201 = pneg %p55
      %p202 = pneg %p79
      %p203 = pneg %p76
      %p204 = pneg %p100
      %p205 = pneg %p97
      %p206 = pneg %p121
      %p207 = pneg %p118
      %p208 = pneg %p147
      %p209 = pneg %p144
      %p210 = scmp.lt.s32.totalorder %s16, 1
      %s211 = scalar_select %p210, %s16, 1
      %s212 = smul.addr %s211, 2
      %s213 = smul.addr %s212, 8
      %s214 = scalar_lea.vmem %s5, %s213
      %p215 = scmp.lt.s32.totalorder %s16, 1
      %s216 = scalar_select %p215, %s16, 1
      %s217 = smul.addr %s216, 2
      %s218 = smul.addr %s217, 4
      %s219 = scalar_lea.vmem %s0, %s218
      %p220 = scmp.lt.s32.totalorder %s16, 1
      %s221 = scalar_select %p220, %s16, 1
      %s222 = smul.addr %s221, 2
      %s223 = smul.addr %s222, 8
      %s224 = scalar_lea.vmem %s5, %s223
      %vm226 = vcmask 516096
      %vm227 = vsmask.f32 256
      %vm228 = vmand %vm226, %vm227
      %v229 = vld [vmem:[#allocation2] sm:$0x1]
      %v230 = vsel %vm228, 0, %v229
      %231 = vst [vmem:[#allocation2] sm:$0x1] %v230
      %vm232 = vsmask.f32 7938
      %vm233 = vmand %vm226, %vm232
      %v234 = vld [vmem:[#allocation2 + $0x8] sm:$0x1]
      %v235 = vsel %vm233, 0, %v234
      %236 = vst [vmem:[#allocation2 + $0x8] sm:$0x1] %v235
      %v237 = vld [vmem:[%s219] sm:$0xf]
      %v238 = vld [vmem:[%s219 + $0x4] sm:$0xf]
      %vm239 = vsmask.f32 4368
      %vm240 = vmor %vm227, %vm239
      %v242 = vshrl.u32 %v237, 16
      %v244 = vrot.slane %v242, 7
      %v245 = vshll.u32 %v237, 16
      %v247 = vor.u32 %v244, %v245
      %v248 = vrot.slane %v244, 4
      %v250 = vshrl.u32 %v238, 16
      %v252 = vrot.slane %v250, 7
      %v253 = vshll.u32 %v238, 16
      %v255 = vor.u32 %v252, %v253
      %v256 = vsel %vm240, %v248, %v255
      %v257 = vrot.slane %v252, 4
      %vm261 = vcmask 519168
      %vm262 = vmand %vm261, %vm232
      %v263 = vld [vmem:[#allocation2] sm:$0xf]
      %v264 = vsel %vm262, %v247, %v263
      %265 = vst [vmem:[#allocation2] sm:$0xf] %v264
      %vm266 = vcmask 519168
      %267 = vst.msk [vmem:[#allocation2 + $0x4] sm:$0xf] %vm266, %v256
      %v268 = vld [vmem:[#allocation2 + $0x8] sm:$0x1]
      %v269 = vsel %vm228, %v257, %v268
      %270 = vst [vmem:[#allocation2 + $0x8] sm:$0x1] %v269
      %v271 = vld [vmem:[#allocation2] sm:$0xf]
      %v272 = vld [vmem:[#allocation2 + $0x4] sm:$0xf]
      %v273 = vld [vmem:[%s1] sm:$0xf]
      %v274 = vld [vmem:[%s1 + $0x4] sm:$0xf]
      %v275 = vld [vmem:[%s1 + $0x8] sm:$0xf]
      %v276 = vld [vmem:[%s1 + $0xc] sm:$0xf]
      %v277 = vld [vmem:[%s1 + $0x10] sm:$0xf]
      %v278 = vld [vmem:[%s1 + $0x14] sm:$0xf]
      %v279 = vld [vmem:[%s1 + $0x18] sm:$0xf]
      %v280 = vld [vmem:[%s1 + $0x1c] sm:$0xf]
      %v281 = vld [vmem:[#allocation2 + $0x8] sm:$0x1]
      %s282 = scalar_lea.vmem %s1, 32
      %v283 = vld [vmem:[%s282] sm:$0xf]
      %v284 = vld [vmem:[%s282 + $0x4] sm:$0xf]
      %v285 = vld [vmem:[%s282 + $0x8] sm:$0xf]
      %v286 = vld [vmem:[%s282 + $0xc] sm:$0xf]
      %v287 = vld [vmem:[%s282 + $0x10] sm:$0xf]
      %v288 = vld [vmem:[%s282 + $0x14] sm:$0xf]
      %v289 = vld [vmem:[%s282 + $0x18] sm:$0xf]
      %v290 = vld [vmem:[%s282 + $0x1c] sm:$0xf]
      %v294 = vunpack.c.l.b16 %v271
      %v295 = vunpack.c.l.b16 %v272
      %v296 = vunpack.c.l.b16 %v281
      %v297 = vpack.c.b16 %v295, %v294
      %v298 = vpack.c.b16 %v296, %v296
      %vm299 = vsmask.f32 7424
      %v301 = vshrl.u32 %v297, 16
      %v303 = vshll.u32 %v297, 16
      %v305 = vrot.slane %v303, 1
      %v306 = vor.u32 %v301, %v305
      %v308 = vshll.u32 %v298, 16
      %v310 = vrot.slane %v308, 1
      %v311 = vsel %vm299, %v306, %v310
      %v320 = vunpack.c.l.b16 %v283
      %v321 = vunpack.c.l.b16 %v284
      %v322 = vunpack.c.l.b16 %v285
      %v323 = vunpack.c.l.b16 %v286
      %v324 = vunpack.c.l.b16 %v287
      %v325 = vunpack.c.l.b16 %v288
      %v326 = vunpack.c.l.b16 %v289
      %v327 = vunpack.c.l.b16 %v290
      %v328 = vpack.c.b16 %v321, %v320
      %v329 = vpack.c.b16 %v323, %v322
      %v330 = vpack.c.b16 %v325, %v324
      %v331 = vpack.c.b16 %v327, %v326
      %vm336 = vcmask 523264
      %v338 = vsel %vm336, %v311, 0
      %340 = vmatpush.bf16.msra.mxu0 0
      %341 = vmatpush.bf16.msra.mxu0 0
      %342 = vmatpush.bf16.msra.mxu0 0
      %343 = vmatpush.bf16.msra.mxu0 0
      %344 = vmatpush.bf16.msra.mxu0 %v331
      %345 = vmatpush.bf16.msra.mxu0 %v330
      %346 = vmatpush.bf16.msra.mxu0 %v329
      %347 = vmatpush.bf16.msra.mxu0 %v328
      %348 = vmatmul.bf16.gmra.mxu0 %v338
      %v349 = vpop.f32.mrf.mxu0
      %v350 = vadd.f32 0.0, %v349
      %v351 = vpop.f32.mrf.mxu0
      %v352 = vadd.f32 0.0, %v351
      %353 = vdwg.mxu0
      %v362 = vunpack.c.l.b16 %v273
      %v363 = vunpack.c.l.b16 %v274
      %v364 = vunpack.c.l.b16 %v275
      %v365 = vunpack.c.l.b16 %v276
      %v366 = vunpack.c.l.b16 %v277
      %v367 = vunpack.c.l.b16 %v278
      %v368 = vunpack.c.l.b16 %v279
      %v369 = vunpack.c.l.b16 %v280
      %v370 = vpack.c.b16 %v363, %v362
      %v371 = vpack.c.b16 %v365, %v364
      %v372 = vpack.c.b16 %v367, %v366
      %v373 = vpack.c.b16 %v369, %v368
      %v378 = vsel %vm336, %v297, 0
      %380 = vmatpush.bf16.msra.mxu0 0
      %381 = vmatpush.bf16.msra.mxu0 0
      %382 = vmatpush.bf16.msra.mxu0 0
      %383 = vmatpush.bf16.msra.mxu0 0
      %384 = vmatpush.bf16.msra.mxu0 %v373
      %385 = vmatpush.bf16.msra.mxu0 %v372
      %386 = vmatpush.bf16.msra.mxu0 %v371
      %387 = vmatpush.bf16.msra.mxu0 %v370
      %388 = vmatmul.bf16.gmra.mxu0 %v378
      %v389 = vpop.f32.mrf.mxu0
      %v390 = vadd.f32 %v350, %v389
      %v391 = vpop.f32.mrf.mxu0
      %v392 = vadd.f32 %v352, %v391
      %393 = vdwg.mxu0
      %v394 = vld [vmem:[#allocation2] sm:$0xe]
      %s395 = scalar_lea.vmem %s1, 64
      %v396 = vld [vmem:[%s395] sm:$0xf]
      %v397 = vld [vmem:[%s395 + $0x4] sm:$0xf]
      %v398 = vld [vmem:[%s395 + $0x8] sm:$0xf]
      %v399 = vld [vmem:[%s395 + $0xc] sm:$0xf]
      %v400 = vld [vmem:[%s395 + $0x10] sm:$0xf]
      %v401 = vld [vmem:[%s395 + $0x14] sm:$0xf]
      %v402 = vld [vmem:[%s395 + $0x18] sm:$0xf]
      %v403 = vld [vmem:[%s395 + $0x1c] sm:$0xf]
      %v405 = vunpack.c.l.b16 %v394
      %v406 = vpack.c.b16 %v295, %v405
      %vm407 = vcmask 1046528
      %v408 = vrot.slane %v406, 1
      %v409 = vrot.slane %v298, 1
      %v410 = vsel %vm407, %v408, %v409
      %v419 = vunpack.c.l.b16 %v396
      %v420 = vunpack.c.l.b16 %v397
      %v421 = vunpack.c.l.b16 %v398
      %v422 = vunpack.c.l.b16 %v399
      %v423 = vunpack.c.l.b16 %v400
      %v424 = vunpack.c.l.b16 %v401
      %v425 = vunpack.c.l.b16 %v402
      %v426 = vunpack.c.l.b16 %v403
      %v427 = vpack.c.b16 %v420, %v419
      %v428 = vpack.c.b16 %v422, %v421
      %v429 = vpack.c.b16 %v424, %v423
      %v430 = vpack.c.b16 %v426, %v425
      %v436 = vsel %vm336, %v410, 0
      %438 = vmatpush.bf16.msra.mxu0 0
      %439 = vmatpush.bf16.msra.mxu0 0
      %440 = vmatpush.bf16.msra.mxu0 0
      %441 = vmatpush.bf16.msra.mxu0 0
      %442 = vmatpush.bf16.msra.mxu0 %v430
      %443 = vmatpush.bf16.msra.mxu0 %v429
      %444 = vmatpush.bf16.msra.mxu0 %v428
      %445 = vmatpush.bf16.msra.mxu0 %v427
      %446 = vmatmul.bf16.gmra.mxu0 %v436
      %v447 = vpop.f32.mrf.mxu0
      %v448 = vadd.f32 0.0, %v447
      %v449 = vpop.f32.mrf.mxu0
      %v450 = vadd.f32 0.0, %v449
      %451 = vdwg.mxu0
      %v452 = vadd.f32 %v390, %v448
      %v453 = vadd.f32 %v392, %v450
      %v454 = vld [vmem:[%s3] sm:$0x1]
      %v456 = vperm.slane %v454, 0
      %v458 = vadd.f32 %v452, %v456
      %v459 = vadd.f32 %v453, %v456
      %v460 = vmax.f32 %v458, 0.0
      %v461 = vmax.f32 %v459, 0.0
      %v462 = vpack.c.bf16 %v460, %v460
      %v463 = vpack.c.bf16 %v461, %v461
      %v465 = vshrl.u32 %v462, 16
      %v467 = vrot.slane %v465, 7
      %v468 = vshll.u32 %v462, 16
      %v470 = vor.u32 %v467, %v468
      %v471 = vrot.slane %v467, 4
      %v473 = vshrl.u32 %v463, 16
      %v475 = vrot.slane %v473, 7
      %v476 = vshll.u32 %v463, 16
      %v478 = vor.u32 %v475, %v476
      %v479 = vsel %vm240, %v471, %v478
      %v480 = vrot.slane %v475, 4
      %vm484 = vcmask 1043456
      %vm485 = vmand %vm484, %vm232
      %v486 = vld [vmem:[#allocation3] sm:$0xf]
      %v487 = vsel %vm485, %v470, %v486
      %488 = vst [vmem:[#allocation3] sm:$0xf] %v487
      %489 = vst [vmem:[#allocation3 + $0x4] sm:$0xf] %v479
      %vm490 = vcmask 1040384
      %vm491 = vmand %vm490, %vm227
      %v492 = vld [vmem:[#allocation3 + $0x8] sm:$0x1]
      %v493 = vsel %vm491, %v480, %v492
      %494 = vst [vmem:[#allocation3 + $0x8] sm:$0x1] %v493
      %v495 = vld [vmem:[#allocation3] sm:$0x1]
      %v496 = vsel %vm491, 0, %v495
      %497 = vst [vmem:[#allocation3] sm:$0x1] %v496
      %vm498 = vmand %vm490, %vm232
      %v499 = vld [vmem:[#allocation3 + $0x8] sm:$0x1]
      %v500 = vsel %vm498, 0, %v499
      %501 = vst [vmem:[#allocation3 + $0x8] sm:$0x1] %v500
      %v502 = vld [vmem:[#allocation3] sm:$0xf]
      %v503 = vld [vmem:[#allocation3 + $0x4] sm:$0xf]
      %v504 = vld [vmem:[%s2] sm:$0xf]
      %v505 = vld [vmem:[%s2 + $0x4] sm:$0xf]
      %v506 = vld [vmem:[%s2 + $0x8] sm:$0xf]
      %v507 = vld [vmem:[%s2 + $0xc] sm:$0xf]
      %v508 = vld [vmem:[%s2 + $0x10] sm:$0xf]
      %v509 = vld [vmem:[%s2 + $0x14] sm:$0xf]
      %v510 = vld [vmem:[%s2 + $0x18] sm:$0xf]
      %v511 = vld [vmem:[%s2 + $0x1c] sm:$0xf]
      %v512 = vld [vmem:[%s2 + $0x20] sm:$0xf]
      %v513 = vld [vmem:[%s2 + $0x24] sm:$0xf]
      %v514 = vld [vmem:[%s2 + $0x28] sm:$0xf]
      %v515 = vld [vmem:[%s2 + $0x2c] sm:$0xf]
      %v516 = vld [vmem:[%s2 + $0x30] sm:$0xf]
      %v517 = vld [vmem:[%s2 + $0x34] sm:$0xf]
      %v518 = vld [vmem:[%s2 + $0x38] sm:$0xf]
      %v519 = vld [vmem:[%s2 + $0x3c] sm:$0xf]
      %v520 = vld [vmem:[#allocation3 + $0x8] sm:$0x1]
      %s521 = scalar_lea.vmem %s2, 64
      %v522 = vld [vmem:[%s521] sm:$0xf]
      %v523 = vld [vmem:[%s521 + $0x4] sm:$0xf]
      %v524 = vld [vmem:[%s521 + $0x8] sm:$0xf]
      %v525 = vld [vmem:[%s521 + $0xc] sm:$0xf]
      %v526 = vld [vmem:[%s521 + $0x10] sm:$0xf]
      %v527 = vld [vmem:[%s521 + $0x14] sm:$0xf]
      %v528 = vld [vmem:[%s521 + $0x18] sm:$0xf]
      %v529 = vld [vmem:[%s521 + $0x1c] sm:$0xf]
      %v530 = vld [vmem:[%s521 + $0x20] sm:$0xf]
      %v531 = vld [vmem:[%s521 + $0x24] sm:$0xf]
      %v532 = vld [vmem:[%s521 + $0x28] sm:$0xf]
      %v533 = vld [vmem:[%s521 + $0x2c] sm:$0xf]
      %v534 = vld [vmem:[%s521 + $0x30] sm:$0xf]
      %v535 = vld [vmem:[%s521 + $0x34] sm:$0xf]
      %v536 = vld [vmem:[%s521 + $0x38] sm:$0xf]
      %v537 = vld [vmem:[%s521 + $0x3c] sm:$0xf]
      %v541 = vunpack.c.l.b16 %v502
      %v542 = vunpack.c.l.b16 %v503
      %v543 = vunpack.c.l.b16 %v520
      %v544 = vpack.c.b16 %v542, %v541
      %v545 = vpack.c.b16 %v543, %v543
      %v547 = vshrl.u32 %v544, 16
      %v549 = vshll.u32 %v544, 16
      %v551 = vrot.slane %v549, 1
      %v552 = vor.u32 %v547, %v551
      %v554 = vshll.u32 %v545, 16
      %v556 = vrot.slane %v554, 1
      %v557 = vsel %vm299, %v552, %v556
      %v575 = vunpack.c.l.b16 %v522
      %v576 = vunpack.c.l.b16 %v523
      %v577 = vunpack.c.l.b16 %v524
      %v578 = vunpack.c.l.b16 %v525
      %v579 = vunpack.c.l.b16 %v526
      %v580 = vunpack.c.l.b16 %v527
      %v581 = vunpack.c.l.b16 %v528
      %v582 = vunpack.c.l.b16 %v529
      %v583 = vunpack.c.l.b16 %v530
      %v584 = vunpack.c.l.b16 %v531
      %v585 = vunpack.c.l.b16 %v532
      %v586 = vunpack.c.l.b16 %v533
      %v587 = vunpack.c.l.b16 %v534
      %v588 = vunpack.c.l.b16 %v535
      %v589 = vunpack.c.l.b16 %v536
      %v590 = vunpack.c.l.b16 %v537
      %v591 = vpack.c.b16 %v576, %v575
      %v592 = vpack.c.b16 %v578, %v577
      %v593 = vpack.c.b16 %v580, %v579
      %v594 = vpack.c.b16 %v582, %v581
      %v595 = vpack.c.b16 %v584, %v583
      %v596 = vpack.c.b16 %v586, %v585
      %v597 = vpack.c.b16 %v588, %v587
      %v598 = vpack.c.b16 %v590, %v589
      %607 = vmatpush.bf16.msra.mxu0 %v598
      %608 = vmatpush.bf16.msra.mxu0 %v597
      %609 = vmatpush.bf16.msra.mxu0 %v596
      %610 = vmatpush.bf16.msra.mxu0 %v595
      %611 = vmatpush.bf16.msra.mxu0 %v594
      %612 = vmatpush.bf16.msra.mxu0 %v593
      %613 = vmatpush.bf16.msra.mxu0 %v592
      %614 = vmatpush.bf16.msra.mxu0 %v591
      %615 = vmatmul.bf16.gmra.mxu0 %v557
      %v616 = vpop.f32.mrf.mxu0
      %v617 = vadd.f32 0.0, %v616
      %v618 = vpop.f32.mrf.mxu0
      %v619 = vadd.f32 0.0, %v618
      %620 = vdwg.mxu0
      %v638 = vunpack.c.l.b16 %v504
      %v639 = vunpack.c.l.b16 %v505
      %v640 = vunpack.c.l.b16 %v506
      %v641 = vunpack.c.l.b16 %v507
      %v642 = vunpack.c.l.b16 %v508
      %v643 = vunpack.c.l.b16 %v509
      %v644 = vunpack.c.l.b16 %v510
      %v645 = vunpack.c.l.b16 %v511
      %v646 = vunpack.c.l.b16 %v512
      %v647 = vunpack.c.l.b16 %v513
      %v648 = vunpack.c.l.b16 %v514
      %v649 = vunpack.c.l.b16 %v515
      %v650 = vunpack.c.l.b16 %v516
      %v651 = vunpack.c.l.b16 %v517
      %v652 = vunpack.c.l.b16 %v518
      %v653 = vunpack.c.l.b16 %v519
      %v654 = vpack.c.b16 %v639, %v638
      %v655 = vpack.c.b16 %v641, %v640
      %v656 = vpack.c.b16 %v643, %v642
      %v657 = vpack.c.b16 %v645, %v644
      %v658 = vpack.c.b16 %v647, %v646
      %v659 = vpack.c.b16 %v649, %v648
      %v660 = vpack.c.b16 %v651, %v650
      %v661 = vpack.c.b16 %v653, %v652
      %670 = vmatpush.bf16.msra.mxu0 %v661
      %671 = vmatpush.bf16.msra.mxu0 %v660
      %672 = vmatpush.bf16.msra.mxu0 %v659
      %673 = vmatpush.bf16.msra.mxu0 %v658
      %674 = vmatpush.bf16.msra.mxu0 %v657
      %675 = vmatpush.bf16.msra.mxu0 %v656
      %676 = vmatpush.bf16.msra.mxu0 %v655
      %677 = vmatpush.bf16.msra.mxu0 %v654
      %678 = vmatmul.bf16.gmra.mxu0 %v544
      %v679 = vpop.f32.mrf.mxu0
      %v680 = vadd.f32 %v617, %v679
      %v681 = vpop.f32.mrf.mxu0
      %v682 = vadd.f32 %v619, %v681
      %683 = vdwg.mxu0
      %v684 = vld [vmem:[#allocation3] sm:$0xe]
      %s685 = scalar_lea.vmem %s2, 128
      %v686 = vld [vmem:[%s685] sm:$0xf]
      %v687 = vld [vmem:[%s685 + $0x4] sm:$0xf]
      %v688 = vld [vmem:[%s685 + $0x8] sm:$0xf]
      %v689 = vld [vmem:[%s685 + $0xc] sm:$0xf]
      %v690 = vld [vmem:[%s685 + $0x10] sm:$0xf]
      %v691 = vld [vmem:[%s685 + $0x14] sm:$0xf]
      %v692 = vld [vmem:[%s685 + $0x18] sm:$0xf]
      %v693 = vld [vmem:[%s685 + $0x1c] sm:$0xf]
      %v694 = vld [vmem:[%s685 + $0x20] sm:$0xf]
      %v695 = vld [vmem:[%s685 + $0x24] sm:$0xf]
      %v696 = vld [vmem:[%s685 + $0x28] sm:$0xf]
      %v697 = vld [vmem:[%s685 + $0x2c] sm:$0xf]
      %v698 = vld [vmem:[%s685 + $0x30] sm:$0xf]
      %v699 = vld [vmem:[%s685 + $0x34] sm:$0xf]
      %v700 = vld [vmem:[%s685 + $0x38] sm:$0xf]
      %v701 = vld [vmem:[%s685 + $0x3c] sm:$0xf]
      %v703 = vunpack.c.l.b16 %v684
      %v704 = vpack.c.b16 %v542, %v703
      %v705 = vrot.slane %v704, 1
      %v706 = vrot.slane %v545, 1
      %v707 = vsel %vm407, %v705, %v706
      %v725 = vunpack.c.l.b16 %v686
      %v726 = vunpack.c.l.b16 %v687
      %v727 = vunpack.c.l.b16 %v688
      %v728 = vunpack.c.l.b16 %v689
      %v729 = vunpack.c.l.b16 %v690
      %v730 = vunpack.c.l.b16 %v691
      %v731 = vunpack.c.l.b16 %v692
      %v732 = vunpack.c.l.b16 %v693
      %v733 = vunpack.c.l.b16 %v694
      %v734 = vunpack.c.l.b16 %v695
      %v735 = vunpack.c.l.b16 %v696
      %v736 = vunpack.c.l.b16 %v697
      %v737 = vunpack.c.l.b16 %v698
      %v738 = vunpack.c.l.b16 %v699
      %v739 = vunpack.c.l.b16 %v700
      %v740 = vunpack.c.l.b16 %v701
      %v741 = vpack.c.b16 %v726, %v725
      %v742 = vpack.c.b16 %v728, %v727
      %v743 = vpack.c.b16 %v730, %v729
      %v744 = vpack.c.b16 %v732, %v731
      %v745 = vpack.c.b16 %v734, %v733
      %v746 = vpack.c.b16 %v736, %v735
      %v747 = vpack.c.b16 %v738, %v737
      %v748 = vpack.c.b16 %v740, %v739
      %757 = vmatpush.bf16.msra.mxu0 %v748
      %758 = vmatpush.bf16.msra.mxu0 %v747
      %759 = vmatpush.bf16.msra.mxu0 %v746
      %760 = vmatpush.bf16.msra.mxu0 %v745
      %761 = vmatpush.bf16.msra.mxu0 %v744
      %762 = vmatpush.bf16.msra.mxu0 %v743
      %763 = vmatpush.bf16.msra.mxu0 %v742
      %764 = vmatpush.bf16.msra.mxu0 %v741
      %765 = vmatmul.bf16.gmra.mxu0 %v707
      %v766 = vpop.f32.mrf.mxu0
      %v767 = vadd.f32 0.0, %v766
      %v768 = vpop.f32.mrf.mxu0
      %v769 = vadd.f32 0.0, %v768
      %770 = vdwg.mxu0
      %v771 = vadd.f32 %v680, %v767
      %v772 = vadd.f32 %v682, %v769
      %v773 = vld [vmem:[%s4] sm:$0x1]
      %v775 = vperm.slane %v773, 0
      %v777 = vadd.f32 %v771, %v775
      %v778 = vadd.f32 %v772, %v775
      %v779 = vmax.f32 %v777, 0.0
      %v780 = vmax.f32 %v778, 0.0
      %781 = vst [vmem:[%s224] sm:$0xff] %v779
      %782 = vst [vmem:[%s224 + $0x8] sm:$0xff] %v780
      %p783 = scmp.lt.s32.totalorder %s16, 1
      %s784 = scalar_select %p783, %s16, 1
      %s785 = smul.addr %s784, 2
      %s786 = smul.addr %s785, 8
      %s787 = scalar_lea.vmem %s5, %s786
      // Predicated region
      $region41: #{double_conv_forward.1} parent=39 // pred_check
        %p788 = pneg %p144
      $region42: #{double_conv_forward.1} parent=39 // pred_check_branch
        %790 = sbr.rel (%p788) target = $region44
      $region43: #{double_conv_forward.1} parent=39 // pred_region
        _
      $region44: #{double_conv_forward.1} parent=39 // pred_fallthru
        _
    $region40: #{double_conv_forward.1} parent=5 // pred_fallthru
      _
    %p791 = scmp.le.s32.totalorder 2, %s11
    // Predicated region
    $region45: #{double_conv_forward.1} parent=5 // pred_check
      %p792 = pneg %p791
    $region46: #{double_conv_forward.1} parent=5 // pred_check_branch
      %794 = sbr.rel (%p792) target = $region48
    $region47: #{double_conv_forward.1} parent=5 // pred_region
      %s795 = ssub.s32 %s11, 2
      // Predicated region
      $region49: #{double_conv_forward.1} parent=47 // pred_check
        %p796 = pneg %p150
      $region50: #{double_conv_forward.1} parent=47 // pred_check_branch
        %798 = sbr.rel (%p796) target = $region52
      $region51: #{double_conv_forward.1} parent=47 // pred_region
        %p799 = scmp.lt.s32.totalorder %s17, 1
        %s800 = scalar_select %p799, %s17, 1
        %s801 = smul.addr %s800, 2
        %s802 = smul.addr %s801, 8
        %s803 = scalar_lea.vmem %s5, %s802
      $region52: #{double_conv_forward.1} parent=47 // pred_fallthru
        _
    $region48: #{double_conv_forward.1} parent=5 // pred_fallthru
      _
  $region6: #{double_conv_forward.1} parent=0 // loop_footer
    %s15 = sadd.s32 1, %s11
  $region7: #{double_conv_forward.1} parent=0 // loop_footer_branch
    %10 = sbr.rel target = $region3
  $region8: #{double_conv_forward.1} parent=0 // loop_exit
    _

</llo_original>
